<compile_context>
chip_gen: v5e
topology: v5e:2x2
jax: 0.10.0
libtpu: 0.0.40
codegen_flags: <defaults>
</compile_context>

<pallas_src>
import jax
import jax.numpy as jnp
from jax import lax
from jax.experimental import pallas as pl
from jax.experimental.pallas import tpu as pltpu


def _round_up(a: int, b: int) -> int:
    return ((a + b - 1) // b) * b


def _sublane_multiple(dtype) -> int:
    # Sub-32-bit dtypes pack along sublanes.
    return {4: 8, 2: 16, 1: 32}[jnp.dtype(dtype).itemsize]


def _pick_tile(dim: int, target: int, align: int):
    """Pick (tile, padded_dim) preferring no padding.

    Order of preference: full-extent block (dim fits in one tile, always
    layout-legal), an aligned exact divisor of dim (no pad, no slice),
    then pad dim up to a multiple of `target`.
    """
    target = max(align, (target // align) * align)
    if dim <= target:
        return dim, dim
    t = target
    while t >= align:
        if dim % t == 0:
            return t, dim
        t -= align
    return target, _round_up(dim, target)


# --------------------------------------------------------------------------
# Kernels
# --------------------------------------------------------------------------

def _decoder_whole_kernel(z_ref, x_ref, o_ref):
    # Whole (small) problem in one step: batched z^T @ x on the MXU.
    o_ref[...] = lax.dot_general(
        z_ref[...], x_ref[...],
        dimension_numbers=(((1,), (1,)), ((0,), (0,))),
        preferred_element_type=jnp.float32,
    ).astype(o_ref.dtype)


def _decoder_tiled_kernel_f32(z_ref, x_ref, o_ref):
    # z_ref: (TM, TN), x_ref: (TM, TK), o_ref: (TN, TK) f32 (resident across m).
    m = pl.program_id(3)
    part = lax.dot_general(
        z_ref[...], x_ref[...],
        dimension_numbers=(((0,), (0,)), ((), ())),
        preferred_element_type=jnp.float32,
    )

    @pl.when(m == 0)
    def _():
        o_ref[...] = part

    @pl.when(m != 0)
    def _():
        o_ref[...] += part


def _decoder_tiled_kernel_acc(z_ref, x_ref, o_ref, acc_ref):
    # Non-f32 outputs: accumulate in an f32 VMEM scratch, cast at the end.
    m = pl.program_id(3)

    @pl.when(m == 0)
    def _():
        acc_ref[...] = jnp.zeros_like(acc_ref)

    acc_ref[...] += lax.dot_general(
        z_ref[...], x_ref[...],
        dimension_numbers=(((0,), (0,)), ((), ())),
        preferred_element_type=jnp.float32,
    )

    @pl.when(m == pl.num_programs(3) - 1)
    def _():
        o_ref[...] = acc_ref[...].astype(o_ref.dtype)


# --------------------------------------------------------------------------
# Wrapper
# --------------------------------------------------------------------------

def decoder_forward(z, x, *, tm=512, tn=1024, tk=1024,
                    small_bytes=2 << 20, force_tiled=False):
    """x_hat = transpose(z, 1, 2) @ x  (batched), via Pallas TPU kernels."""
    B, M, N = z.shape
    B2, M2, K = x.shape
    assert B == B2 and M == M2, "batch / contraction dims must match"

    out_dtype = jnp.promote_types(z.dtype, x.dtype)
    if z.dtype != out_dtype:
        z = z.astype(out_dtype)
    if x.dtype != out_dtype:
        x = x.astype(out_dtype)
    itemsize = jnp.dtype(out_dtype).itemsize

    # ---------------- small-problem path: one grid step, batch in-block -----
    total_bytes = (z.size + x.size + B * N * K) * itemsize
    if not force_tiled and total_bytes <= small_bytes:
        return pl.pallas_call(
            _decoder_whole_kernel,
            out_shape=jax.ShapeDtypeStruct((B, N, K), out_dtype),
            grid=(1,),
            in_specs=[
                pl.BlockSpec((B, M, N), lambda i: (0, 0, 0)),
                pl.BlockSpec((B, M, K), lambda i: (0, 0, 0)),
            ],
            out_specs=pl.BlockSpec((B, N, K), lambda i: (0, 0, 0)),
        )(z, x)

    # ---------------- tiled MXU path ----------------------------------------
    sub = _sublane_multiple(out_dtype)
    TM, M_pad = _pick_tile(M, tm, sub)    # reduction tile (sublane dim)
    TN, N_pad = _pick_tile(N, tn, 128)    # output rows
    TK, K_pad = _pick_tile(K, tk, 128)    # output cols (lane dim)

    # Pad only when a dim is tiled and not an exact multiple (contraction-dim
    # zero padding is a numerical no-op; padded N/K rows/cols are sliced off).
    zp = z if (M_pad == M and N_pad == N) else jnp.pad(
        z, ((0, 0), (0, M_pad - M), (0, N_pad - N)))
    xp = x if (M_pad == M and K_pad == K) else jnp.pad(
        x, ((0, 0), (0, M_pad - M), (0, K_pad - K)))

    grid = (B, N_pad // TN, K_pad // TK, M_pad // TM)

    use_acc = out_dtype != jnp.float32
    kernel = _decoder_tiled_kernel_acc if use_acc else _decoder_tiled_kernel_f32
    scratch = [pltpu.VMEM((TN, TK), jnp.float32)] if use_acc else []

    # VMEM footprint: double-buffered inputs + double-buffered output + acc.
    footprint = (2 * (TM * TN + TM * TK) * itemsize
                 + 2 * TN * TK * itemsize
                 + (TN * TK * 4 if use_acc else 0))
    vmem_limit = int(min(max(footprint * 5 // 4 + (4 << 20), 32 << 20), 56 << 20))

    # HBM traffic including re-stream factors (z re-read per K tile, x per N
    # tile) so XLA's scheduler sees realistic byte counts.
    bytes_accessed = B * ((K_pad // TK) * M_pad * N_pad * itemsize
                          + (N_pad // TN) * M_pad * K_pad * itemsize
                          + N_pad * K_pad * itemsize)

    out = pl.pallas_call(
        kernel,
        out_shape=jax.ShapeDtypeStruct((B, N_pad, K_pad), out_dtype),
        grid_spec=pltpu.PrefetchScalarGridSpec(
            num_scalar_prefetch=0,
            grid=grid,
            in_specs=[
                pl.BlockSpec((pl.Squeezed(), TM, TN),
                             lambda b, n, k, m: (b, m, n)),
                pl.BlockSpec((pl.Squeezed(), TM, TK),
                             lambda b, n, k, m: (b, m, k)),
            ],
            out_specs=pl.BlockSpec((pl.Squeezed(), TN, TK),
                                   lambda b, n, k, m: (b, n, k)),
            scratch_shapes=scratch,
        ),
        compiler_params=pltpu.CompilerParams(
            dimension_semantics=("parallel", "parallel", "parallel", "arbitrary"),
            vmem_limit_bytes=vmem_limit,
        ),
        cost_estimate=pl.CostEstimate(
            flops=2 * B * M_pad * N_pad * K_pad,
            transcendentals=0,
            bytes_accessed=bytes_accessed,
        ),
    )(zp, xp)

    if N_pad != N or K_pad != K:
        out = out[:, :N, :K]
    return out


if __name__ == "__main__":
    key = jax.random.PRNGKey(0)
    kz, kx, kz2, kx2, kz3, kx3 = jax.random.split(key, 6)

    # 1) Small shapes consistent with the forward: z (B, M, N), x (B, M, K).
    #    Exercises the single-step whole-problem path.
    B, M, N, K = 2, 8, 16, 32
    z = jax.random.normal(kz, (B, M, N), dtype=jnp.float32)
    x = jax.random.normal(kx, (B, M, K), dtype=jnp.float32)
    x_hat = decoder_forward(z, x)
    jax.block_until_ready(x_hat)
    ref = jnp.einsum("bmn,bmk->bnk", z, x)
    assert x_hat.shape == (B, N, K)
    assert jnp.allclose(x_hat, ref, atol=1e-5, rtol=1e-5)

    # 2) Non-aligned shapes, forced tiled path with small tiles: exercises the
    #    multi-step reduction, divisor tile selection (M=72 -> TM=24) and the
    #    pad/slice fallback (N=200, K=160), f32 accumulate-into-output kernel.
    B2, M2, N2, K2 = 2, 72, 200, 160
    z2 = jax.random.normal(kz2, (B2, M2, N2), dtype=jnp.float32)
    x2 = jax.random.normal(kx2, (B2, M2, K2), dtype=jnp.float32)
    out2 = decoder_forward(z2, x2, tm=32, tn=128, tk=128, force_tiled=True)
    jax.block_until_ready(out2)
    ref2 = jnp.einsum("bmn,bmk->bnk", z2, x2)
    assert out2.shape == (B2, N2, K2)
    assert jnp.allclose(out2, ref2, atol=1e-4, rtol=1e-4)

    # 3) bf16 tiled path: exercises the scratch-accumulator kernel
    #    (full-extent tiles, single reduction step -> matches XLA bitwise-ish).
    B3, M3, N3, K3 = 2, 64, 256, 128
    z3 = jax.random.normal(kz3, (B3, M3, N3), dtype=jnp.bfloat16)
    x3 = jax.random.normal(kx3, (B3, M3, K3), dtype=jnp.bfloat16)
    out3 = decoder_forward(z3, x3, force_tiled=True)
    jax.block_until_ready(out3)
    ref3 = jnp.einsum("bmn,bmk->bnk", z3, x3)
    assert out3.shape == (B3, N3, K3) and out3.dtype == jnp.bfloat16
    assert jnp.allclose(out3.astype(jnp.float32), ref3.astype(jnp.float32),
                        atol=1e-2, rtol=1e-2)

    print("KERNEL_OK")
</pallas_src>

<mosaic_0001>
module attributes {stable_mosaic.version = 11 : i64} {
  func.func @_decoder_whole_kernel(%arg0: i32, %arg1: memref<2x8x16xf32, #tpu.memory_space<vmem>>, %arg2: memref<2x8x32xf32, #tpu.memory_space<vmem>>, %arg3: memref<2x16x32xf32, #tpu.memory_space<vmem>>) attributes {dimension_semantics = [#tpu.dimension_semantics<arbitrary>], iteration_bounds = array<i64: 1>, scalar_prefetch = 0 : i64, scratch_operands = 0 : i64, tpu.core_type = #tpu.core_type<tc>, window_params = [{pipeline_mode = #tpu.pipeline_mode<synchronous>, transform_indices = @transform_0, window_bounds = array<i64: 2, 8, 16>}, {pipeline_mode = #tpu.pipeline_mode<synchronous>, transform_indices = @transform_1, window_bounds = array<i64: 2, 8, 32>}, {pipeline_mode = #tpu.pipeline_mode<synchronous>, transform_indices = @transform_2, window_bounds = array<i64: 2, 16, 32>}]} {
    %c0 = arith.constant 0 : index
    %c0_0 = arith.constant 0 : index
    %c0_1 = arith.constant 0 : index
    %0 = vector.load %arg1[%c0, %c0_0, %c0_1] : memref<2x8x16xf32, #tpu.memory_space<vmem>>, vector<2x8x16xf32>
    %c0_2 = arith.constant 0 : index
    %c0_3 = arith.constant 0 : index
    %c0_4 = arith.constant 0 : index
    %1 = vector.load %arg2[%c0_2, %c0_3, %c0_4] : memref<2x8x32xf32, #tpu.memory_space<vmem>>, vector<2x8x32xf32>
    %cst = arith.constant dense<0.000000e+00> : vector<2x16x32xf32>
    %2 = tpu.matmul %0, %1, %cst {dimension_numbers = #tpu.dot_dimension_numbers<[1], [1], [2], [2], [0, 0, 0, 2, 1, 2], [0], [0]>} : vector<2x8x16xf32>, vector<2x8x32xf32>, vector<2x16x32xf32> -> vector<2x16x32xf32>
    %c0_5 = arith.constant 0 : index
    %c0_6 = arith.constant 0 : index
    %c0_7 = arith.constant 0 : index
    %3 = vector.load %arg3[%c0_5, %c0_6, %c0_7] : memref<2x16x32xf32, #tpu.memory_space<vmem>>, vector<2x16x32xf32>
    tpu.vector_store %arg3[%c0_5, %c0_6, %c0_7], %2 {strides = array<i32>} : memref<2x16x32xf32, #tpu.memory_space<vmem>>, vector<2x16x32xf32>,
    return
  }
  func.func @transform_0(%arg0: i32) -> (i32, i32, i32) {
    %c0_i32 = arith.constant 0 : i32
    %c0_i32_0 = arith.constant 0 : i32
    %c0_i32_1 = arith.constant 0 : i32
    %c0_i32_2 = arith.constant 0 : i32
    return %c0_i32, %c0_i32_0, %c0_i32_1 : i32, i32, i32
  }
  func.func @transform_1(%arg0: i32) -> (i32, i32, i32) {
    %c0_i32 = arith.constant 0 : i32
    %c0_i32_0 = arith.constant 0 : i32
    %c0_i32_1 = arith.constant 0 : i32
    %c0_i32_2 = arith.constant 0 : i32
    return %c0_i32, %c0_i32_0, %c0_i32_1 : i32, i32, i32
  }
  func.func @transform_2(%arg0: i32) -> (i32, i32, i32) {
    %c0_i32 = arith.constant 0 : i32
    %c0_i32_0 = arith.constant 0 : i32
    %c0_i32_1 = arith.constant 0 : i32
    %c0_i32_2 = arith.constant 0 : i32
    return %c0_i32, %c0_i32_0, %c0_i32_1 : i32, i32, i32
  }
}

</mosaic_0001>

<llo_original>
// kernel: tpu_custom_call.1
$region0: #{tpu_custom_call.1}
  #allocation0 [shape = 'u32[]', space=smem, size = 0x4, offset = 0x4, fixed_abs, tag = 'smem constant byte address 0x4 - core index']
  #allocation1 [shape = 'u32[72,128]{1,0:T(1,128)}', space=vmem, size = 0x9000, scoped, tag = 'internal scratch']
  %s0 = inlined_call_operand.hbm [shape: f32[2,8,16], index: 0, kind: input, shape index: {}]
  %s1 = inlined_call_operand.hbm [shape: f32[2,8,32], index: 1, kind: input, shape index: {}]
  %s2 = inlined_call_operand.hbm [shape: f32[2,16,32], index: 2, kind: output, shape index: {}]
  %s3 = sld [smem:[#allocation0]]
  $region26: #{tpu_custom_call.1} parent=0
    _
  %s5 = ssub.s32 1, %s3
  %s6 = scalar_select 0, %s5, %s3
  $region1: #{tpu_custom_call.1} parent=0
    #allocation2 [shape = 'u8[8192]{0}', space=vmem, size = 0x2000, scoped, tag = 'input window, operand 0, single buffered']
    #allocation3 [shape = 's32[1]{0}', space=sflag, size = 0x4, scoped, tag = 'scoped memory for tpu_custom_call.1']
    #allocation4 [shape = 's32[1]{0}', space=sflag, size = 0x4, scoped, tag = 'scoped memory for tpu_custom_call.1']
    #allocation5 [shape = 'u8[8192]{0}', space=vmem, size = 0x2000, scoped, tag = 'input window, operand 1, single buffered']
    #allocation6 [shape = 's32[1]{0}', space=sflag, size = 0x4, scoped, tag = 'scoped memory for tpu_custom_call.1']
    #allocation7 [shape = 'u8[16384]{0}', space=vmem, size = 0x4000, scoped, tag = 'output window, operand 0, single buffered']
    %7 = vsyncpa [#allocation3], 0
    %8 = vsyncpa [#allocation6], 0
    %9 = vsyncpa [#allocation4], 0
    // Predicated region
    $region2: #{tpu_custom_call.1} parent=1 // pred_check
      _
    $region3: #{tpu_custom_call.1} parent=1 // pred_check_branch
      %11 = sbr.rel (0) target = $region5
    $region4: #{tpu_custom_call.1} parent=1 // pred_region
      %13 = vsyncadd [#allocation3], 0
      %s14 = sshll.u32 %s0, 4
      %s15 = int_to_ptr.hbm [resolvable:$true] %s14
      %s16 = sshll.u32 [#allocation2], 4
      %s17 = int_to_ptr.vmem [resolvable:$true] %s16
      %22 = dma.hbm_to_vmem [thread:$0]  %s15, 256, %s17, [#allocation3], 128, 128, 8
    $region5: #{tpu_custom_call.1} parent=1 // pred_fallthru
      _
    // Predicated region
    $region6: #{tpu_custom_call.1} parent=1 // pred_check
      _
    $region7: #{tpu_custom_call.1} parent=1 // pred_check_branch
      %24 = sbr.rel (0) target = $region9
    $region8: #{tpu_custom_call.1} parent=1 // pred_region
      %26 = vsyncadd [#allocation6], 0
      %s27 = sshll.u32 %s1, 4
      %s28 = int_to_ptr.hbm [resolvable:$true] %s27
      %s29 = sshll.u32 [#allocation5], 4
      %s30 = int_to_ptr.vmem [resolvable:$true] %s29
      %35 = dma.hbm_to_vmem [thread:$0]  %s28, 256, %s30, [#allocation6], 128, 128, 8
    $region9: #{tpu_custom_call.1} parent=1 // pred_fallthru
      _
    // Predicated region
    $region10: #{tpu_custom_call.1} parent=1 // pred_check
      _
    $region11: #{tpu_custom_call.1} parent=1 // pred_check_branch
      %37 = sbr.rel (0) target = $region13
    $region12: #{tpu_custom_call.1} parent=1 // pred_region
      %39 = dma.done [#allocation3], 256
    $region13: #{tpu_custom_call.1} parent=1 // pred_fallthru
      _
    // Predicated region
    $region14: #{tpu_custom_call.1} parent=1 // pred_check
      _
    $region15: #{tpu_custom_call.1} parent=1 // pred_check_branch
      %41 = sbr.rel (0) target = $region17
    $region16: #{tpu_custom_call.1} parent=1 // pred_region
      %43 = dma.done [#allocation6], 256
    $region17: #{tpu_custom_call.1} parent=1 // pred_fallthru
      _
    %v44 = vld [vmem:[#allocation2] sm:$0xff]
    %v45 = vld [vmem:[#allocation2 + $0x8] sm:$0xff]
    %v46 = vld [vmem:[#allocation5] sm:$0xff]
    %v47 = vld [vmem:[#allocation5 + $0x8] sm:$0xff]
    %48 = vxpose.xlu0.b32.start [1/16] %v44, 128
    %49 = vxpose.xlu0.b32.cont [2/16] 0.0, 128
    %50 = vxpose.xlu0.b32.cont [3/16] 0.0, 128
    %51 = vxpose.xlu0.b32.cont [4/16] 0.0, 128
    %52 = vxpose.xlu0.b32.cont [5/16] 0.0, 128
    %53 = vxpose.xlu0.b32.cont [6/16] 0.0, 128
    %54 = vxpose.xlu0.b32.cont [7/16] 0.0, 128
    %55 = vxpose.xlu0.b32.cont [8/16] 0.0, 128
    %56 = vxpose.xlu0.b32.cont [9/16] 0.0, 128
    %57 = vxpose.xlu0.b32.cont [10/16] 0.0, 128
    %58 = vxpose.xlu0.b32.cont [11/16] 0.0, 128
    %59 = vxpose.xlu0.b32.cont [12/16] 0.0, 128
    %60 = vxpose.xlu0.b32.cont [13/16] 0.0, 128
    %61 = vxpose.xlu0.b32.cont [14/16] 0.0, 128
    %62 = vxpose.xlu0.b32.cont [15/16] 0.0, 128
    %63 = vxpose.xlu0.b32.end [16/16] 0.0, 128
    %v64 = vpop.trf.xlu0
    %v65 = vpop.trf.xlu0
    %v66 = vpop.trf.xlu0
    %v67 = vpop.trf.xlu0
    %v68 = vpop.trf.xlu0
    %v69 = vpop.trf.xlu0
    %v70 = vpop.trf.xlu0
    %v71 = vpop.trf.xlu0
    %v72 = vpop.trf.xlu0
    %v73 = vpop.trf.xlu0
    %v74 = vpop.trf.xlu0
    %v75 = vpop.trf.xlu0
    %v76 = vpop.trf.xlu0
    %v77 = vpop.trf.xlu0
    %v78 = vpop.trf.xlu0
    %v79 = vpop.trf.xlu0
    %vm80 = vcmask 64512
    %v82 = vsel %vm80, %v64, 0
    %v85 = vsel %vm80, %v65, 0
    %87 = vmatpush.msra.mxu0 0.0
    %88 = vmatpush.msra.mxu0 0.0
    %89 = vmatpush.msra.mxu0 0.0
    %90 = vmatpush.msra.mxu0 0.0
    %91 = vmatpush.msra.mxu0 0.0
    %92 = vmatpush.msra.mxu0 0.0
    %93 = vmatpush.msra.mxu0 0.0
    %94 = vmatpush.msra.mxu0 0.0
    %95 = vmatpush.msra.mxu0 0.0
    %96 = vmatpush.msra.mxu0 0.0
    %97 = vmatpush.msra.mxu0 0.0
    %98 = vmatpush.msra.mxu0 0.0
    %99 = vmatpush.msra.mxu0 0.0
    %100 = vmatpush.msra.mxu0 0.0
    %101 = vmatpush.msra.mxu0 0.0
    %102 = vmatpush.msra.mxu0 %v46
    %103 = vmatmul.f32.gmra.mxu0 %v82
    %v104 = vpop.f32.mrf.mxu0
    %v105 = vadd.f32 0.0, %v104
    %106 = vmatmul.f32.gmra.mxu0 %v85
    %v107 = vpop.f32.mrf.mxu0
    %v108 = vadd.f32 0.0, %v107
    %109 = vdwg.mxu0
    %110 = vxpose.xlu0.b32.start [1/16] %v45, 128
    %111 = vxpose.xlu0.b32.cont [2/16] 0.0, 128
    %112 = vxpose.xlu0.b32.cont [3/16] 0.0, 128
    %113 = vxpose.xlu0.b32.cont [4/16] 0.0, 128
    %114 = vxpose.xlu0.b32.cont [5/16] 0.0, 128
    %115 = vxpose.xlu0.b32.cont [6/16] 0.0, 128
    %116 = vxpose.xlu0.b32.cont [7/16] 0.0, 128
    %117 = vxpose.xlu0.b32.cont [8/16] 0.0, 128
    %118 = vxpose.xlu0.b32.cont [9/16] 0.0, 128
    %119 = vxpose.xlu0.b32.cont [10/16] 0.0, 128
    %120 = vxpose.xlu0.b32.cont [11/16] 0.0, 128
    %121 = vxpose.xlu0.b32.cont [12/16] 0.0, 128
    %122 = vxpose.xlu0.b32.cont [13/16] 0.0, 128
    %123 = vxpose.xlu0.b32.cont [14/16] 0.0, 128
    %124 = vxpose.xlu0.b32.cont [15/16] 0.0, 128
    %125 = vxpose.xlu0.b32.end [16/16] 0.0, 128
    %v126 = vpop.trf.xlu0
    %v127 = vpop.trf.xlu0
    %v128 = vpop.trf.xlu0
    %v129 = vpop.trf.xlu0
    %v130 = vpop.trf.xlu0
    %v131 = vpop.trf.xlu0
    %v132 = vpop.trf.xlu0
    %v133 = vpop.trf.xlu0
    %v134 = vpop.trf.xlu0
    %v135 = vpop.trf.xlu0
    %v136 = vpop.trf.xlu0
    %v137 = vpop.trf.xlu0
    %v138 = vpop.trf.xlu0
    %v139 = vpop.trf.xlu0
    %v140 = vpop.trf.xlu0
    %v141 = vpop.trf.xlu0
    %v143 = vsel %vm80, %v126, 0
    %v146 = vsel %vm80, %v127, 0
    %148 = vmatpush.msra.mxu0 0.0
    %149 = vmatpush.msra.mxu0 0.0
    %150 = vmatpush.msra.mxu0 0.0
    %151 = vmatpush.msra.mxu0 0.0
    %152 = vmatpush.msra.mxu0 0.0
    %153 = vmatpush.msra.mxu0 0.0
    %154 = vmatpush.msra.mxu0 0.0
    %155 = vmatpush.msra.mxu0 0.0
    %156 = vmatpush.msra.mxu0 0.0
    %157 = vmatpush.msra.mxu0 0.0
    %158 = vmatpush.msra.mxu0 0.0
    %159 = vmatpush.msra.mxu0 0.0
    %160 = vmatpush.msra.mxu0 0.0
    %161 = vmatpush.msra.mxu0 0.0
    %162 = vmatpush.msra.mxu0 0.0
    %163 = vmatpush.msra.mxu0 %v47
    %164 = vmatmul.f32.gmra.mxu0 %v143
    %v165 = vpop.f32.mrf.mxu0
    %v166 = vadd.f32 0.0, %v165
    %167 = vmatmul.f32.gmra.mxu0 %v146
    %v168 = vpop.f32.mrf.mxu0
    %v169 = vadd.f32 0.0, %v168
    %170 = vdwg.mxu0
    %vm171 = vcmask 261120
    %172 = vst.msk [vmem:[#allocation7] sm:$0xff] %vm171, %v105
    %173 = vst.msk [vmem:[#allocation7 + $0x8] sm:$0xff] %vm171, %v108
    %174 = vst.msk [vmem:[#allocation7 + $0x10] sm:$0xff] %vm171, %v166
    %175 = vst.msk [vmem:[#allocation7 + $0x18] sm:$0xff] %vm171, %v169
    // Predicated region
    $region18: #{tpu_custom_call.1} parent=1 // pred_check
      _
    $region19: #{tpu_custom_call.1} parent=1 // pred_check_branch
      %177 = sbr.rel (0) target = $region21
    $region20: #{tpu_custom_call.1} parent=1 // pred_region
      %179 = vsyncadd [#allocation4], 0
      %s180 = sshll.u32 [#allocation7], 4
      %s181 = int_to_ptr.vmem [resolvable:$true] %s180
      %s182 = sshll.u32 %s2, 4
      %s183 = int_to_ptr.hbm [resolvable:$true] %s182
      %188 = dma.vmem_to_hbm [thread:$0]  %s181, 512, %s183, [#allocation4], 128, 128, 8
    $region21: #{tpu_custom_call.1} parent=1 // pred_fallthru
      _
    // Predicated region
    $region22: #{tpu_custom_call.1} parent=1 // pred_check
      _
    $region23: #{tpu_custom_call.1} parent=1 // pred_check_branch
      %190 = sbr.rel (0) target = $region25
    $region24: #{tpu_custom_call.1} parent=1 // pred_region
      %192 = dma.done [#allocation4], 512
    $region25: #{tpu_custom_call.1} parent=1 // pred_fallthru
      _
    %193 = vsyncpa [#allocation3], 1
    %194 = vsyncpa [#allocation6], 1
    %195 = vsyncpa [#allocation4], 1

</llo_original>
